<compile_context>
chip_gen: v7x
topology: tpu7x:2x2x1
jax: 0.10.0
libtpu: 0.0.40
codegen_flags: <defaults>
</compile_context>

<pallas_src>
import functools
import math

import jax
import jax.numpy as jnp
from jax.experimental import pallas as pl
from jax.experimental.pallas import tpu as pltpu


# ---------------------------------------------------------------------------
# Stage 1: fused per-head linear projection (hoisted out of the attention loop)
# ---------------------------------------------------------------------------
def _project_heads_kernel(x_ref, wt_ref, o_ref, *, scale):
    """x_ref: (1, TL, H, D) f32;  wt_ref: (D, D) bf16 (= W^T);  o_ref: (1, TL, H, D) bf16."""
    tl, h, d = x_ref.shape[1], x_ref.shape[2], x_ref.shape[3]
    # fold heads into the M dimension: one MXU matmul instead of H narrow ones.
    x2 = x_ref[0].reshape(tl * h, d).astype(jnp.bfloat16)
    y = jnp.dot(x2, wt_ref[...], preferred_element_type=jnp.float32)
    if scale != 1.0:
        y = y * jnp.float32(scale)
    o_ref[0] = y.reshape(tl, h, d).astype(o_ref.dtype)


def _project_heads(x, wt_bf16, heads, head_dim, *, scale=1.0, l_tile=None):
    """x: (N, L, E) f32  ->  (N, L, H, D) bf16 projected activations."""
    n, l, e = x.shape
    assert heads * head_dim == e
    x4 = x.reshape(n, l, heads, head_dim)          # free (row-major) reshape
    if l_tile is None:
        l_tile = l if l <= 512 else 512
    assert l % l_tile == 0 and (l_tile == l or l_tile % 8 == 0)

    kernel = functools.partial(_project_heads_kernel, scale=scale)
    return pl.pallas_call(
        kernel,
        out_shape=jax.ShapeDtypeStruct((n, l, heads, head_dim), jnp.bfloat16),
        grid_spec=pltpu.PrefetchScalarGridSpec(
            num_scalar_prefetch=0,
            grid=(n, l // l_tile),
            in_specs=[
                pl.BlockSpec((1, l_tile, heads, head_dim),
                             lambda b, li: (b, li, 0, 0)),
                pl.BlockSpec((head_dim, head_dim), lambda b, li: (0, 0)),
            ],
            out_specs=pl.BlockSpec((1, l_tile, heads, head_dim),
                                   lambda b, li: (b, li, 0, 0)),
        ),
        compiler_params=pltpu.CompilerParams(
            dimension_semantics=("parallel", "parallel")),
    )(x4, wt_bf16)


# ---------------------------------------------------------------------------
# Stage 2: flash-style attention + output projection
# ---------------------------------------------------------------------------
def _flash_attention_kernel(q_ref, k_ref, v_ref, mask_ref, wot_ref, bo_ref,
                            out_ref, m_sc, l_sc, acc_sc):
    """One grid step == (batch n, query tile qi, key tile ki).

    q_ref:    (1, H, TQ, D) bf16   (already scaled by 1/sqrt(embed_size))
    k_ref:    (1, H, TK, D) bf16
    v_ref:    (1, H, TK, D) bf16
    mask_ref: (1, 1, TQ, TK) int8, 0 => masked
    wot_ref:  (H, D, E) bf16       per-head slices of Wo^T
    bo_ref:   (1, E)  f32
    out_ref:  (1, TQ, E)
    m/l/acc:  online-softmax state, f32 VMEM scratch (persist across ki)
    """
    ki = pl.program_id(2)

    @pl.when(ki == 0)
    def _():
        m_sc[...] = jnp.full_like(m_sc, -jnp.inf)
        l_sc[...] = jnp.zeros_like(l_sc)
        acc_sc[...] = jnp.zeros_like(acc_sc)

    q = q_ref[0]                                                 # (H, TQ, D)
    k = k_ref[0]                                                 # (H, TK, D)
    v = v_ref[0]                                                 # (H, TK, D)

    # scores for this tile: batched over heads, bf16 operands, f32 MXU acc.
    s = jax.lax.dot_general(
        q, k, dimension_numbers=(((2,), (2,)), ((0,), (0,))),
        preferred_element_type=jnp.float32)                      # (H, TQ, TK)

    # additive mask bias, computed ONCE per tile and shared by all heads.
    bias = jnp.where(mask_ref[0, 0] == 0,
                     jnp.float32(-1e20), jnp.float32(0.0))       # (TQ, TK)
    s = s + bias[None]

    # ---- online softmax update (element-wise math kept in f32: v5e friendly)
    m_prev = m_sc[...]                                           # (H, TQ, 1)
    m_new = jnp.maximum(m_prev, jnp.max(s, axis=-1, keepdims=True))
    alpha = jnp.exp(m_prev - m_new)
    p = jnp.exp(s - m_new)                                       # (H, TQ, TK)
    l_sc[...] = alpha * l_sc[...] + jnp.sum(p, axis=-1, keepdims=True)
    pv = jax.lax.dot_general(
        p.astype(jnp.bfloat16), v,
        dimension_numbers=(((2,), (1,)), ((0,), (0,))),
        preferred_element_type=jnp.float32)                      # (H, TQ, D)
    acc_sc[...] = alpha * acc_sc[...] + pv
    m_sc[...] = m_new

    @pl.when(ki == pl.num_programs(2) - 1)
    def _():
        ctx = acc_sc[...] * pl.reciprocal(l_sc[...], approx=True)  # (H, TQ, D)
        # Output projection: ONE batched MXU contraction over all heads
        # (replaces the old serial per-head matmul+add chain).  Mosaic does
        # not lower multi-contracting-dim dot_general / major-dim transposes,
        # so the cross-head reduction is done with a few cheap VALU adds.
        partial = jax.lax.dot_general(
            ctx.astype(jnp.bfloat16), wot_ref[...],
            dimension_numbers=(((2,), (1,)), ((0,), (0,))),
            preferred_element_type=jnp.float32)                    # (H, TQ, E)
        out = partial[0]
        for hh in range(1, partial.shape[0]):
            out = out + partial[hh]
        out_ref[0] = (out + bo_ref[...]).astype(out_ref.dtype)


def self_attention_pallas(values, keys, query, mask, params, *,
                          embed_size, heads, q_tile=None, k_tile=None):
    """values/keys/query: (N, L, E) f32; mask: (N, 1, Lq, Lk) (0 => masked) or None."""
    N, Lq, E = query.shape
    Lk = keys.shape[1]
    Lv = values.shape[1]
    D = E // heads
    assert D * heads == E
    assert Lv == Lk, "attention requires value_length == key_length"

    wv, wk, wq, wo, bo = params
    scale = 1.0 / math.sqrt(float(embed_size))       # module scales by 1/sqrt(embed_size)

    # Pre-transpose weights on host (y = x @ W^T) and cast to bf16 MXU operands.
    wvt = wv.T.astype(jnp.bfloat16)
    wkt = wk.T.astype(jnp.bfloat16)
    wqt = wq.T.astype(jnp.bfloat16)
    wot = wo.T.reshape(heads, D, E).astype(jnp.bfloat16)   # per-head slices of Wo^T
    bo2 = bo.reshape(1, E).astype(jnp.float32)

    if mask is None:
        mask = jnp.ones((N, 1, Lq, Lk), dtype=jnp.int8)
    mask_i8 = (mask != 0).astype(jnp.int8)           # 4x smaller DMA than int32

    # ---- Stage 1: per-head projections done ONCE (not per query tile), bf16 out.
    v_p = _project_heads(values, wvt, heads, D)
    k_p = _project_heads(keys, wkt, heads, D)
    q_p = _project_heads(query, wqt, heads, D, scale=scale)

    # Head-major (N, H, L, D) for the attention kernel.  Single bf16 XLA
    # transpose per tensor (half the bytes of the previous f32 layout pass).
    v_h = v_p.transpose(0, 2, 1, 3)
    k_h = k_p.transpose(0, 2, 1, 3)
    q_h = q_p.transpose(0, 2, 1, 3)

    # ---- Stage 2: flash attention with an Lk grid axis (bounded VMEM).
    if q_tile is None:
        q_tile = Lq if Lq <= 256 else 256
    if k_tile is None:
        k_tile = Lk if Lk <= 512 else 512
    assert Lq % q_tile == 0 and (q_tile == Lq or q_tile % 8 == 0)
    assert Lk % k_tile == 0 and (k_tile == Lk or k_tile % 128 == 0)
    n_qt = Lq // q_tile
    n_kt = Lk // k_tile

    grid_spec = pltpu.PrefetchScalarGridSpec(
        num_scalar_prefetch=0,
        grid=(N, n_qt, n_kt),
        in_specs=[
            pl.BlockSpec((1, heads, q_tile, D), lambda n, qi, ki: (n, 0, qi, 0)),    # Q
            pl.BlockSpec((1, heads, k_tile, D), lambda n, qi, ki: (n, 0, ki, 0)),    # K
            pl.BlockSpec((1, heads, k_tile, D), lambda n, qi, ki: (n, 0, ki, 0)),    # V
            pl.BlockSpec((1, 1, q_tile, k_tile), lambda n, qi, ki: (n, 0, qi, ki)),  # mask
            pl.BlockSpec((heads, D, E), lambda n, qi, ki: (0, 0, 0)),                # Wo^T/head
            pl.BlockSpec((1, E), lambda n, qi, ki: (0, 0)),                          # bo
        ],
        out_specs=pl.BlockSpec((1, q_tile, E), lambda n, qi, ki: (n, qi, 0)),
        scratch_shapes=[
            pltpu.VMEM((heads, q_tile, 1), jnp.float32),   # running max  (m)
            pltpu.VMEM((heads, q_tile, 1), jnp.float32),   # running denom (l)
            pltpu.VMEM((heads, q_tile, D), jnp.float32),   # running context
        ],
    )

    return pl.pallas_call(
        _flash_attention_kernel,
        out_shape=jax.ShapeDtypeStruct((N, Lq, E), query.dtype),
        grid_spec=grid_spec,
        compiler_params=pltpu.CompilerParams(
            dimension_semantics=("parallel", "parallel", "arbitrary"),
            vmem_limit_bytes=48 * 1024 * 1024),
    )(q_h, k_h, v_h, mask_i8, wot, bo2)


# ---------------------------------------------------------------------------
# Pure-JAX reference (mirrors the intended PyTorch forward, full f32)
# ---------------------------------------------------------------------------
def self_attention_reference(values, keys, query, mask, params, *,
                             embed_size, heads):
    wv, wk, wq, wo, bo = params
    N, Lq, E = query.shape
    Lk, Lv = keys.shape[1], values.shape[1]
    D = E // heads

    v = values.reshape(N, Lv, heads, D) @ wv.T
    k = keys.reshape(N, Lk, heads, D) @ wk.T
    q = query.reshape(N, Lq, heads, D) @ wq.T

    energy = jnp.einsum("nqhd,nkhd->nhqk", q, k)
    energy = jnp.where(mask == 0, jnp.float32(-1e20), energy)
    attn = jax.nn.softmax(energy / math.sqrt(float(embed_size)), axis=3)
    out = jnp.einsum("nhql,nlhd->nqhd", attn, v).reshape(N, Lq, heads * D)
    return out @ wo.T + bo


if __name__ == "__main__":
    # Small shapes consistent with the module.
    N = 2
    SEQ = 8
    EMBED = 32
    HEADS = 4
    D = EMBED // HEADS

    key = jax.random.PRNGKey(0)
    k1, k2, k3, k4, k5, k6, k7, k8 = jax.random.split(key, 8)

    values = jax.random.normal(k1, (N, SEQ, EMBED), dtype=jnp.float32)
    keys_in = jax.random.normal(k2, (N, SEQ, EMBED), dtype=jnp.float32)
    query = jax.random.normal(k3, (N, SEQ, EMBED), dtype=jnp.float32)

    # causal mask (N, 1, Lq, Lk), 0 => masked out
    mask = jnp.broadcast_to(
        jnp.tril(jnp.ones((SEQ, SEQ), dtype=jnp.int32))[None, None],
        (N, 1, SEQ, SEQ)).astype(jnp.int32)

    # Deterministic parameter init (shapes follow nn.Linear: weight=(out,in)).
    wv = 0.1 * jax.random.normal(k4, (D, D), dtype=jnp.float32)
    wk = 0.1 * jax.random.normal(k5, (D, D), dtype=jnp.float32)
    wq = 0.1 * jax.random.normal(k6, (D, D), dtype=jnp.float32)
    wo = 0.1 * jax.random.normal(k7, (EMBED, EMBED), dtype=jnp.float32)
    bo = 0.1 * jax.random.normal(k8, (EMBED,), dtype=jnp.float32)
    params = (wv, wk, wq, wo, bo)

    out = self_attention_pallas(values, keys_in, query, mask, params,
                                embed_size=EMBED, heads=HEADS)
    out = jax.block_until_ready(out)

    ref = self_attention_reference(values, keys_in, query, mask, params,
                                   embed_size=EMBED, heads=HEADS)
    assert out.shape == (N, SEQ, EMBED)
    # Tolerance covers bf16 MXU operands (f32 accumulation) and the EUP
    # approximate reciprocal in the softmax denominator.
    assert jnp.allclose(out, ref, rtol=2e-2, atol=2e-2), "mismatch vs reference"

    print("KERNEL_OK")
</pallas_src>

<mosaic_0001>
module attributes {stable_mosaic.version = 11 : i64} {
  func.func @_project_heads_kernel(%arg0: i32, %arg1: i32, %arg2: memref<1x8x4x8xf32, #tpu.memory_space<vmem>>, %arg3: memref<8x8xbf16, #tpu.memory_space<vmem>>, %arg4: memref<1x8x4x8xbf16, #tpu.memory_space<vmem>>) attributes {dimension_semantics = [#tpu.dimension_semantics<parallel>, #tpu.dimension_semantics<parallel>], iteration_bounds = array<i64: 2, 1>, scalar_prefetch = 0 : i64, scratch_operands = 0 : i64, tpu.core_type = #tpu.core_type<tc>, window_params = [{transform_indices = @transform_0, window_bounds = array<i64: 1, 8, 4, 8>}, {pipeline_mode = #tpu.pipeline_mode<synchronous>, transform_indices = @transform_1, window_bounds = array<i64: 8, 8>}, {transform_indices = @transform_2, window_bounds = array<i64: 1, 8, 4, 8>}]} {
    %c0 = arith.constant 0 : index
    %c0_0 = arith.constant 0 : index
    %c0_1 = arith.constant 0 : index
    %c0_2 = arith.constant 0 : index
    %0 = vector.load %arg2[%c0, %c0_0, %c0_1, %c0_2] : memref<1x8x4x8xf32, #tpu.memory_space<vmem>>, vector<1x8x4x8xf32>
    %1 = vector.shape_cast %0 : vector<1x8x4x8xf32> to vector<8x4x8xf32>
    %2 = vector.shape_cast %1 : vector<8x4x8xf32> to vector<32x8xf32>
    %3 = arith.truncf %2 : vector<32x8xf32> to vector<32x8xbf16>
    %c0_3 = arith.constant 0 : index
    %c0_4 = arith.constant 0 : index
    %4 = vector.load %arg3[%c0_3, %c0_4] : memref<8x8xbf16, #tpu.memory_space<vmem>>, vector<8x8xbf16>
    %cst = arith.constant dense<0.000000e+00> : vector<32x8xf32>
    %5 = tpu.matmul %3, %4, %cst {dimension_numbers = #tpu.dot_dimension_numbers<[1], [0], [0], [1], [0, 0, 1, 1], [], []>} : vector<32x8xbf16>, vector<8x8xbf16>, vector<32x8xf32> -> vector<32x8xf32>
    %6 = vector.shape_cast %5 : vector<32x8xf32> to vector<8x4x8xf32>
    %7 = arith.truncf %6 : vector<8x4x8xf32> to vector<8x4x8xbf16>
    %c0_5 = arith.constant 0 : index
    %c0_6 = arith.constant 0 : index
    %c0_7 = arith.constant 0 : index
    %c0_8 = arith.constant 0 : index
    %8 = vector.load %arg4[%c0_5, %c0_6, %c0_7, %c0_8] : memref<1x8x4x8xbf16, #tpu.memory_space<vmem>>, vector<1x8x4x8xbf16>
    %9 = vector.shape_cast %8 : vector<1x8x4x8xbf16> to vector<8x4x8xbf16>
    %10 = vector.shape_cast %7 : vector<8x4x8xbf16> to vector<1x8x4x8xbf16>
    tpu.vector_store %arg4[%c0_5, %c0_6, %c0_7, %c0_8], %10 {strides = array<i32>} : memref<1x8x4x8xbf16, #tpu.memory_space<vmem>>, vector<1x8x4x8xbf16>,
    return
  }
  func.func @transform_0(%arg0: i32, %arg1: i32) -> (i32, i32, i32, i32) {
    %c0_i32 = arith.constant 0 : i32
    %c0_i32_0 = arith.constant 0 : i32
    %c0_i32_1 = arith.constant 0 : i32
    return %arg0, %arg1, %c0_i32, %c0_i32_0 : i32, i32, i32, i32
  }
  func.func @transform_1(%arg0: i32, %arg1: i32) -> (i32, i32) {
    %c0_i32 = arith.constant 0 : i32
    %c0_i32_0 = arith.constant 0 : i32
    %c0_i32_1 = arith.constant 0 : i32
    return %c0_i32, %c0_i32_0 : i32, i32
  }
  func.func @transform_2(%arg0: i32, %arg1: i32) -> (i32, i32, i32, i32) {
    %c0_i32 = arith.constant 0 : i32
    %c0_i32_0 = arith.constant 0 : i32
    %c0_i32_1 = arith.constant 0 : i32
    return %arg0, %arg1, %c0_i32, %c0_i32_0 : i32, i32, i32, i32
  }
}

</mosaic_0001>

<llo_original>
// kernel: tpu_custom_call.1
$region0: #{tpu_custom_call.1}
  #allocation0 [shape = 'u32[]', space=smem, size = 0x4, offset = 0x4, fixed_abs, tag = 'smem constant byte address 0x4 - core index']
  #allocation1 [shape = 'u32[144,128]{1,0:T(1,128)}', space=vmem, size = 0x12000, scoped, tag = 'internal scratch']
  %s0 = inlined_call_operand.hbm [shape: f32[2,8,4,8], index: 0, kind: input, shape index: {}]
  %s1 = inlined_call_operand.hbm [shape: bf16[8,8], index: 1, kind: input, shape index: {}]
  %s2 = inlined_call_operand.hbm [shape: bf16[2,8,4,8], index: 2, kind: output, shape index: {}]
  %s3 = sld [smem:[#allocation0]]
  $region49: #{tpu_custom_call.1} parent=0
    _
  %s5 = ssub.s32 1, %s3
  %s6 = scalar_select 0, %s5, %s3
  $region1: #{tpu_custom_call.1} parent=0
    #allocation2 [shape = 'u8[32768]{0}', space=vmem, size = 0x8000, scoped, tag = 'input window, operand 0']
    #allocation3 [shape = 's32[2]{0}', space=sflag, size = 0x8, scoped, tag = 'scoped memory for tpu_custom_call.1']
    #allocation4 [shape = 's32[2]{0}', space=sflag, size = 0x8, scoped, tag = 'scoped memory for tpu_custom_call.1']
    #allocation5 [shape = 'u8[2048]{0}', space=vmem, size = 0x800, scoped, tag = 'input window, operand 1, single buffered']
    #allocation6 [shape = 's32[1]{0}', space=sflag, size = 0x4, scoped, tag = 'scoped memory for tpu_custom_call.1']
    #allocation7 [shape = 'u8[16384]{0}', space=vmem, size = 0x4000, scoped, tag = 'output window, operand 0']
    %7 = vsyncpa [#allocation3], 0
    %s8 = scalar_lea.sflag [#allocation3], 1
    %9 = vsyncpa %s8, 0
    %10 = vsyncpa [#allocation6], 0
    %11 = vsyncpa [#allocation4], 0
    %s12 = scalar_lea.sflag [#allocation4], 1
    %13 = vsyncpa %s12, 0
    loop: start=0, step=1, limit=4
    $region2: #{tpu_custom_call.1} parent=1 // loop_pre_header
      _
    $region3: #{tpu_custom_call.1} parent=1 // loop_header
      %s15 = sphi 0, %s19
      %p16 = scmp.ge.s32.totalorder %s15, 4
      %s22 = sphi 0, %s34
      %s23 = sphi 0, %s30
      %s24 = sphi 0, %s22
      %s25 = sphi 0, %s23
      %s26 = sphi 0, %s24
      %s27 = sphi 0, %s25
      %s39 = sphi 0, %s41
      %s42 = sphi 0, %s39
      %s43 = sphi 0, %s42
      %s59 = sphi 0, %s43
      %s63 = sphi 0, %s63
      %s65 = sphi 0, %s63
      %s66 = sphi 0, %s65
      %s80 = sphi 0, %s66
      %s88 = sphi 0, %s90
      %s91 = sphi 0, %s88
      %s92 = sphi 0, %s91
      %s108 = sphi 0, %s92
    $region4: #{tpu_custom_call.1} parent=1 // loop_header_branch
      %18 = sbr.rel (%p16) target = $region8
    $region5: #{tpu_custom_call.1} parent=1 // loop_body
      %s20 = ssub.s32 %s15, 1
      %s21 = ssub.s32 %s15, 2
      %s28 = sadd.s32 1, %s23
      %p29 = scmp.ge.s32.totalorder %s28, 1
      %s30 = scalar_select %p29, 0, %s28
      %s31 = sadd.s32 1, %s22
      %s32 = scalar_select %p29, %s31, %s22
      %p33 = scmp.ge.s32.totalorder %s32, 2
      %s34 = scalar_select %p33, 0, %s32
      %s35 = ssub.s32 %s22, %s34
      %s36 = ssub.s32 %s23, %s30
      %s37 = sor.u32 %s35, %s36
      %p38 = scmp.eq.s32.totalorder %s37, 0
      %s40 = sadd.s32 %s39, 1
      %s41 = scalar_select %p38, %s39, %s40
      %p44 = pneg %p38
      %p45 = scmp.eq.s32.totalorder %s15, 1
      %p46 = por %p44, %p45
      %p47 = scmp.ne.s32.totalorder %s39, %s42
      %p48 = scmp.eq.s32.totalorder %s15, 0
      %p49 = por %p47, %p48
      %p50 = scmp.ne.s32.totalorder %s39, %s42
      %p51 = scmp.eq.s32.totalorder %s20, 1
      %p52 = por %p50, %p51
      %p53 = scmp.ne.s32.totalorder %s42, %s43
      %p54 = scmp.eq.s32.totalorder %s20, 0
      %p55 = por %p53, %p54
      %p56 = scmp.ne.s32.totalorder %s42, %s43
      %p57 = scmp.eq.s32.totalorder %s21, 1
      %p58 = por %p56, %p57
      %p60 = scmp.ne.s32.totalorder %s43, %s59
      %p61 = scmp.eq.s32.totalorder %s21, 0
      %p62 = por %p60, %p61
      %s64 = sadd.s32 %s63, 1
      %p67 = scmp.eq.s32.totalorder %s15, 1
      %p68 = scmp.ne.s32.totalorder %s63, %s65
      %p69 = scmp.eq.s32.totalorder %s15, 0
      %p70 = por %p68, %p69
      %p71 = scmp.ne.s32.totalorder %s63, %s65
      %p72 = scmp.eq.s32.totalorder %s20, 1
      %p73 = por %p71, %p72
      %p74 = scmp.ne.s32.totalorder %s65, %s66
      %p75 = scmp.eq.s32.totalorder %s20, 0
      %p76 = por %p74, %p75
      %p77 = scmp.ne.s32.totalorder %s65, %s66
      %p78 = scmp.eq.s32.totalorder %s21, 1
      %p79 = por %p77, %p78
      %p81 = scmp.ne.s32.totalorder %s66, %s80
      %p82 = scmp.eq.s32.totalorder %s21, 0
      %p83 = por %p81, %p82
      %s84 = ssub.s32 %s22, %s34
      %s85 = ssub.s32 %s23, %s30
      %s86 = sor.u32 %s84, %s85
      %p87 = scmp.eq.s32.totalorder %s86, 0
      %s89 = sadd.s32 %s88, 1
      %s90 = scalar_select %p87, %s88, %s89
      %p93 = pneg %p87
      %p94 = scmp.eq.s32.totalorder %s15, 1
      %p95 = por %p93, %p94
      %p96 = scmp.ne.s32.totalorder %s88, %s91
      %p97 = scmp.eq.s32.totalorder %s15, 0
      %p98 = por %p96, %p97
      %p99 = scmp.ne.s32.totalorder %s88, %s91
      %p100 = scmp.eq.s32.totalorder %s20, 1
      %p101 = por %p99, %p100
      %p102 = scmp.ne.s32.totalorder %s91, %s92
      %p103 = scmp.eq.s32.totalorder %s20, 0
      %p104 = por %p102, %p103
      %p105 = scmp.ne.s32.totalorder %s91, %s92
      %p106 = scmp.eq.s32.totalorder %s21, 1
      %p107 = por %p105, %p106
      %p109 = scmp.ne.s32.totalorder %s92, %s108
      %p110 = scmp.eq.s32.totalorder %s21, 0
      %p111 = por %p109, %p110
      %p112 = scmp.le.s32.totalorder 1, %s15
      %p113 = scmp.lt.s32.totalorder %s15, 3
      %p114 = pnand %p112, %p113
      %p115 = pneg %p114
      // Predicated region
      $region9: #{tpu_custom_call.1} parent=5 // pred_check
        _
      $region10: #{tpu_custom_call.1} parent=5 // pred_check_branch
        %117 = sbr.rel (%p114) target = $region12
      $region11: #{tpu_custom_call.1} parent=5 // pred_region
        %s118 = ssub.s32 %s15, 1
        // Predicated region
        $region13: #{tpu_custom_call.1} parent=11 // pred_check
          %p119 = pneg %p76
        $region14: #{tpu_custom_call.1} parent=11 // pred_check_branch
          %121 = sbr.rel (%p119) target = $region16
        $region15: #{tpu_custom_call.1} parent=11 // pred_region
          %s123 = ssub.s32 64, 64
          %124 = vsyncadd [#allocation6], %s123
          %s126 = sshll.u32 [#allocation5], 4
          %s127 = int_to_ptr.vmem [resolvable:$true] %s126
          %129 = dma.hbm_to_vmem [thread:$0]  %s1, 64, %s127, [#allocation6]
        $region16: #{tpu_custom_call.1} parent=11 // pred_fallthru
          _
      $region12: #{tpu_custom_call.1} parent=5 // pred_fallthru
        _
      %p130 = scmp.lt.s32.totalorder %s15, 2
      // Predicated region
      $region17: #{tpu_custom_call.1} parent=5 // pred_check
        %p131 = pneg %p130
      $region18: #{tpu_custom_call.1} parent=5 // pred_check_branch
        %133 = sbr.rel (%p131) target = $region20
      $region19: #{tpu_custom_call.1} parent=5 // pred_region
        // Predicated region
        $region21: #{tpu_custom_call.1} parent=19 // pred_check
          %p134 = pneg %p49
        $region22: #{tpu_custom_call.1} parent=19 // pred_check_branch
          %136 = sbr.rel (%p134) target = $region24
        $region23: #{tpu_custom_call.1} parent=19 // pred_region
          %s137 = sand.u32 %s39, 1
          %s138 = scalar_lea.sflag [#allocation3], %s137
          %s139 = sand.u32 %s39, 1
          %s140 = smul.addr %s139, 32
          %s141 = scalar_lea.vmem [#allocation2], %s140
          %s142 = smul.u32 8, %s23
          %s144 = ssub.s32 512, 512
          %145 = vsyncadd %s138, %s144
          %s146 = smul.addr %s22, 8
          %s147 = sadd.s32 %s142, %s146
          %s148 = smul.addr %s147, 64
          %s149 = scalar_lea.hbm %s0, %s148
          %s150 = sshll.u32 %s141, 4
          %s151 = int_to_ptr.vmem [resolvable:$true] %s150
          %156 = dma.hbm_to_vmem [thread:$0]  %s149, 512, %s151, %s138, 64, 64, 4
        $region24: #{tpu_custom_call.1} parent=19 // pred_fallthru
          _
      $region20: #{tpu_custom_call.1} parent=5 // pred_fallthru
        _
      %p157 = scmp.le.s32.totalorder 1, %s15
      %p158 = scmp.lt.s32.totalorder %s15, 3
      %p159 = pnand %p157, %p158
      %p160 = pneg %p159
      // Predicated region
      $region25: #{tpu_custom_call.1} parent=5 // pred_check
        _
      $region26: #{tpu_custom_call.1} parent=5 // pred_check_branch
        %162 = sbr.rel (%p159) target = $region28
      $region27: #{tpu_custom_call.1} parent=5 // pred_region
        %s163 = ssub.s32 %s15, 1
        %s164 = sand.u32 %s42, 1
        %s165 = scalar_lea.sflag [#allocation3], %s164
        %s166 = sand.u32 %s42, 1
        %s167 = smul.addr %s166, 32
        %s168 = scalar_lea.vmem [#allocation2], %s167
        // Predicated region
        $region29: #{tpu_custom_call.1} parent=27 // pred_check
          %p169 = pneg %p55
        $region30: #{tpu_custom_call.1} parent=27 // pred_check_branch
          %171 = sbr.rel (%p169) target = $region32
        $region31: #{tpu_custom_call.1} parent=27 // pred_region
          %172 = dma.done %s165, 512
        $region32: #{tpu_custom_call.1} parent=27 // pred_fallthru
          _
        // Predicated region
        $region33: #{tpu_custom_call.1} parent=27 // pred_check
          %p173 = pneg %p76
        $region34: #{tpu_custom_call.1} parent=27 // pred_check_branch
          %175 = sbr.rel (%p173) target = $region36
        $region35: #{tpu_custom_call.1} parent=27 // pred_region
          %176 = dma.done [#allocation6], 64
        $region36: #{tpu_custom_call.1} parent=27 // pred_fallthru
          _
        %s177 = sand.u32 %s42, 1
        %s178 = scalar_lea.sflag [#allocation3], %s177
        %s179 = sand.u32 %s42, 1
        %s180 = smul.addr %s179, 32
        %s181 = scalar_lea.vmem [#allocation2], %s180
        %p182 = pneg %p55
        %p183 = pneg %p52
        %p184 = pneg %p76
        %p185 = pneg %p73
        %p186 = pneg %p104
        %p187 = pneg %p101
        %s188 = sand.u32 %s91, 1
        %s189 = scalar_lea.sflag [#allocation4], %s188
        %s190 = sand.u32 %s91, 1
        %s191 = smul.addr %s190, 16
        %s192 = scalar_lea.vmem [#allocation7], %s191
        %s193 = smul.u32 8, %s25
        %s194 = smul.u32 8, %s25
        %v196 = vld [vmem:[%s168] sm:$0xf]
        %v197 = vld [vmem:[%s168 + $0x4] sm:$0xf]
        %v198 = vld [vmem:[%s168 + $0x8] sm:$0xf]
        %v199 = vld [vmem:[%s168 + $0xc] sm:$0xf]
        %v200 = vld [vmem:[%s168 + $0x10] sm:$0xf]
        %v201 = vld [vmem:[%s168 + $0x14] sm:$0xf]
        %v202 = vld [vmem:[%s168 + $0x18] sm:$0xf]
        %v203 = vld [vmem:[%s168 + $0x1c] sm:$0xf]
        %v212 = vcombine.low %v196, %v197
        %v213 = vcombine.low %v198, %v199
        %v214 = vcombine.low %v200, %v201
        %v215 = vcombine.low %v202, %v203
        %v220 = vpack.c.bf16 %v213, %v212
        %v221 = vpack.c.bf16 %v215, %v214
        %v222 = vld [vmem:[#allocation5] sm:$0xf]
        %vm223 = vcmask 64512
        %v225 = vsel %vm223, %v220, 0
        %v228 = vsel %vm223, %v221, 0
        %vm230 = vcmask 1043456
        %v232 = vsel %vm230, %v222, 0
        %234 = vmatprep.subr.bf16.mxu0 0
        %235 = vmatpush1.bf16.msra.mxu0 %v232
        %236 = vmatprep.subr.bf16.mxu0 0
        %237 = vmatpush1.bf16.msra.mxu0 0
        %238 = vmatprep.subr.bf16.mxu0 0
        %239 = vmatpush1.bf16.msra.mxu0 0
        %240 = vmatprep.subr.bf16.mxu0 0
        %241 = vmatpush1.bf16.msra.mxu0 0
        %242 = vmatprep.subr.bf16.mxu0 0
        %243 = vmatpush1.bf16.msra.mxu0 0
        %244 = vmatprep.subr.bf16.mxu0 0
        %245 = vmatpush1.bf16.msra.mxu0 0
        %246 = vmatprep.subr.bf16.mxu0 0
        %247 = vmatpush1.bf16.msra.mxu0 0
        %248 = vmatprep.subr.bf16.mxu0 0
        %249 = vmatpush1.bf16.msra.mxu0 0
        %250 = vmatprep.subr.bf16.mxu0 0
        %251 = vmatpush1.bf16.msra.mxu0 0
        %252 = vmatprep.subr.bf16.mxu0 0
        %253 = vmatpush1.bf16.msra.mxu0 0
        %254 = vmatprep.subr.bf16.mxu0 0
        %255 = vmatpush1.bf16.msra.mxu0 0
        %256 = vmatprep.subr.bf16.mxu0 0
        %257 = vmatpush1.bf16.msra.mxu0 0
        %258 = vmatprep.subr.bf16.mxu0 0
        %259 = vmatpush1.bf16.msra.mxu0 0
        %260 = vmatprep.subr.bf16.mxu0 0
        %261 = vmatpush1.bf16.msra.mxu0 0
        %262 = vmatprep.subr.bf16.mxu0 0
        %263 = vmatpush1.bf16.msra.mxu0 0
        %264 = vmatprep.subr.bf16.mxu0 0
        %265 = vmatpush1.bf16.msra.mxu0 0
        %266 = vmatprep.mubr.bf16.mxu0 0
        %267 = vmatmul.mubr.bf16.gmra.mrb[0].mxu0 %v225
        %v268 = vpop.f32.mrb[0].mxu0
        %v269 = vadd.f32 0.0, %v268
        %v270 = vpop.f32.mrb[0].mxu0
        %v271 = vpop.f32.mrb[0].mxu0
        %v272 = vadd.f32 0.0, %v271
        %v273 = vpop.f32.mrb[0].mxu0
        %274 = vmatprep.mubr.bf16.mxu0 0
        %275 = vmatmul.mubr.bf16.gmra.mrb[0].mxu0 %v228
        %v276 = vpop.f32.mrb[0].mxu0
        %v277 = vadd.f32 0.0, %v276
        %v278 = vpop.f32.mrb[0].mxu0
        %v279 = vpop.f32.mrb[0].mxu0
        %v280 = vadd.f32 0.0, %v279
        %v281 = vpop.f32.mrb[0].mxu0
        %282 = vdwg.mxu0
        %v287 = vcombine.high %v269, %v269
        %v288 = vcombine.high %v272, %v272
        %v289 = vcombine.high %v277, %v277
        %v290 = vcombine.high %v280, %v280
        %v295 = vpack.c.bf16 %v269, %v269
        %v296 = vpack.c.bf16 %v287, %v287
        %v297 = vpack.c.bf16 %v272, %v272
        %v298 = vpack.c.bf16 %v288, %v288
        %v299 = vpack.c.bf16 %v277, %v277
        %v300 = vpack.c.bf16 %v289, %v289
        %v301 = vpack.c.bf16 %v280, %v280
        %v302 = vpack.c.bf16 %v290, %v290
        %vm303 = vcmask 58368
        %304 = vst.msk [vmem:[%s192] sm:$0x3] %vm303, %v295
        %305 = vst.msk [vmem:[%s192 + $0x2] sm:$0x3] %vm303, %v296
        %306 = vst.msk [vmem:[%s192 + $0x4] sm:$0x3] %vm303, %v297
        %307 = vst.msk [vmem:[%s192 + $0x6] sm:$0x3] %vm303, %v298
        %308 = vst.msk [vmem:[%s192 + $0x8] sm:$0x3] %vm303, %v299
        %309 = vst.msk [vmem:[%s192 + $0xa] sm:$0x3] %vm303, %v300
        %310 = vst.msk [vmem:[%s192 + $0xc] sm:$0x3] %vm303, %v301
        %311 = vst.msk [vmem:[%s192 + $0xe] sm:$0x3] %vm303, %v302
        %s312 = sand.u32 %s91, 1
        %s313 = scalar_lea.sflag [#allocation4], %s312
        %s314 = sand.u32 %s91, 1
        %s315 = smul.addr %s314, 16
        %s316 = scalar_lea.vmem [#allocation7], %s315
        // Predicated region
        $region37: #{tpu_custom_call.1} parent=27 // pred_check
          %p317 = pneg %p101
        $region38: #{tpu_custom_call.1} parent=27 // pred_check_branch
          %319 = sbr.rel (%p317) target = $region40
        $region39: #{tpu_custom_call.1} parent=27 // pred_region
          %s320 = smul.u32 8, %s25
          %s322 = ssub.s32 256, 256
          %323 = vsyncadd %s313, %s322
          %s324 = smul.addr %s24, 8
          %s325 = sadd.s32 %s320, %s324
          %s326 = smul.addr %s325, 32
          %s327 = scalar_lea.hbm %s2, %s326
          %s328 = sshll.u32 %s316, 4
          %s329 = int_to_ptr.vmem [resolvable:$true] %s328
          %334 = dma.vmem_to_hbm [thread:$0]  %s329, 256, %s327, %s313, 32, 32, 2
        $region40: #{tpu_custom_call.1} parent=27 // pred_fallthru
          _
      $region28: #{tpu_custom_call.1} parent=5 // pred_fallthru
        _
      %p335 = scmp.le.s32.totalorder 2, %s15
      // Predicated region
      $region41: #{tpu_custom_call.1} parent=5 // pred_check
        %p336 = pneg %p335
      $region42: #{tpu_custom_call.1} parent=5 // pred_check_branch
        %338 = sbr.rel (%p336) target = $region44
      $region43: #{tpu_custom_call.1} parent=5 // pred_region
        %s339 = ssub.s32 %s15, 2
        // Predicated region
        $region45: #{tpu_custom_call.1} parent=43 // pred_check
          %p340 = pneg %p107
        $region46: #{tpu_custom_call.1} parent=43 // pred_check_branch
          %342 = sbr.rel (%p340) target = $region48
        $region47: #{tpu_custom_call.1} parent=43 // pred_region
          %s343 = sand.u32 %s92, 1
          %s344 = scalar_lea.sflag [#allocation4], %s343
          %s345 = sand.u32 %s92, 1
          %s346 = smul.addr %s345, 16
          %s347 = scalar_lea.vmem [#allocation7], %s346
          %348 = dma.done %s344, 256
        $region48: #{tpu_custom_call.1} parent=43 // pred_fallthru
          _
      $region44: #{tpu_custom_call.1} parent=5 // pred_fallthru
        _
    $region6: #{tpu_custom_call.1} parent=1 // loop_footer
      %s19 = sadd.s32 1, %s15
    $region7: #{tpu_custom_call.1} parent=1 // loop_footer_branch
      %14 = sbr.rel target = $region3
    $region8: #{tpu_custom_call.1} parent=1 // loop_exit
      _
    %349 = vsyncpa [#allocation3], 1
    %s350 = scalar_lea.sflag [#allocation3], 1
    %351 = vsyncpa %s350, 1
    %352 = vsyncpa [#allocation6], 1
    %353 = vsyncpa [#allocation4], 1
    %s354 = scalar_lea.sflag [#allocation4], 1
    %355 = vsyncpa %s354, 1

</llo_original>
